<compile_context>
chip_gen: v7x
topology: tpu7x:2x2x1
jax: 0.10.0
libtpu: 0.0.40
codegen_flags: <defaults>
</compile_context>

<pallas_src>
import functools

import jax
import jax.numpy as jnp
from jax.experimental import pallas as pl
from jax.experimental.pallas import tpu as pltpu


def _focal_loss_kernel(logits_ref, targets_ref, out_ref, acc_ref,
                       *, alpha, gamma, n_total, tile_rows, tiles_per_shard):
    s = pl.program_id(0)          # shard (megacore-parallel) axis
    j = pl.program_id(1)          # tile (reduction) axis

    @pl.when(j == 0)
    def _init():
        acc_ref[...] = jnp.zeros_like(acc_ref)

    x = logits_ref[...].astype(jnp.float32)            # (tile_rows, C)
    t = targets_ref[...]                               # (tile_rows, 1) int32
    tr, c = x.shape

    # Numerically stable log-sum-exp per row.
    m = jnp.max(x, axis=-1, keepdims=True)             # (tr, 1)
    lse = jnp.log(jnp.sum(jnp.exp(x - m), axis=-1, keepdims=True)) + m

    # Gather the target-class logit via an iota mask (one hit per row).
    cls_ids = jax.lax.broadcasted_iota(jnp.int32, (tr, c), 1)
    tgt_logit = jnp.sum(jnp.where(cls_ids == t, x, 0.0), axis=-1, keepdims=True)

    ce = lse - tgt_logit                                # == F.cross_entropy(..., 'none')
    pt = jnp.exp(-ce)
    u = jnp.maximum(1.0 - pt, 0.0)                      # clamp fp-rounding negatives

    g = float(gamma)
    if g == 2.0:
        w = u * u                                       # single VPU multiply, no EUP
    elif g == float(int(g)) and int(g) >= 0:
        w = jnp.ones_like(u)
        for _ in range(int(g)):
            w = w * u
    else:
        w = jnp.power(u, g)

    focal = w * ce
    if float(alpha) != 1.0:
        focal = alpha * focal

    # Mask rows past the true N.  This covers (a) the partial last tile of the
    # unpadded input (garbage rows from the edge DMA) and (b) fully
    # out-of-range tiles whose index_map was clamped.  Must stay BEFORE the
    # accumulate; jnp.where does not propagate NaN/Inf from the dropped branch.
    tile_idx = s * tiles_per_shard + j
    row_ids = tile_idx * tile_rows + jax.lax.broadcasted_iota(jnp.int32, (tr, 1), 0)
    focal = jnp.where(row_ids < n_total, focal, 0.0)

    # Per-row accumulate on the VPU; defer the cross-sublane reduce to finalize.
    acc_ref[...] += focal                               # (tile_rows, 1)

    @pl.when(j == tiles_per_shard - 1)
    def _finalize():
        out_ref[...] = jnp.sum(acc_ref[...], axis=0, keepdims=True)   # (1, 1) shard sum


def _round_up(x, m):
    return ((x + m - 1) // m) * m


def _sublane_multiple(dtype):
    """Packed-row multiple of the second-minor dim for this dtype."""
    return {4: 8, 2: 16, 1: 32}.get(jnp.dtype(dtype).itemsize, 8)


def _vmem_capacity_bytes():
    try:
        cap = getattr(pltpu.get_tpu_info(), "vmem_capacity_bytes", None)
        if cap:
            return int(cap)
    except Exception:
        pass
    return 64 << 20   # conservative fallback (v7x per-TC VMEM)


_DMA_BLOCK_TARGET = 4 << 20   # aim ~4 MiB of input logits per pipelined block


def _pick_tile_rows(n, c, in_itemsize, sublane_mult, vmem_budget_bytes):
    """Largest row tile satisfying both the VMEM budget and the DMA-block target."""
    # VMEM bytes per tile row: double-buffered input logits, f32 cast + exp
    # intermediates, and the (8,128)-lane-padded int32 targets block (x2 bufs).
    per_row = 2 * c * in_itemsize + 2 * c * 4 + 2 * 128 * 4
    vmem_rows = max(sublane_mult, vmem_budget_bytes // max(per_row, 1))
    dma_rows = max(sublane_mult, _DMA_BLOCK_TARGET // max(c * in_itemsize, 1))
    tile = min(vmem_rows, dma_rows, _round_up(n, sublane_mult))
    tile = max(sublane_mult, (tile // sublane_mult) * sublane_mult)
    return int(tile)


def focal_loss(logits, targets, alpha=1.0, gamma=2.0, tile_rows=None, num_shards=2):
    """logits: (N, C) float (f32 or bf16); targets: (N,) int class ids. Returns scalar f32."""
    n, c = logits.shape
    in_itemsize = jnp.dtype(logits.dtype).itemsize
    sub_mult = _sublane_multiple(logits.dtype)

    # Per-generation VMEM budget: ~48 MiB on v7x (64 MiB phys), ~96 MiB on v5e/v6e.
    vmem_cap = _vmem_capacity_bytes()
    vmem_limit = int(min(vmem_cap * 3 // 4, 100 << 20))

    if tile_rows is None:
        tile_rows = _pick_tile_rows(n, c, in_itemsize, sub_mult, vmem_limit * 3 // 4)
    else:
        tile_rows = max(sub_mult, _round_up(int(tile_rows), sub_mult))

    targets2d = targets.astype(jnp.int32).reshape(n, 1)

    # Tiny pad only when a single block would exceed the whole array (n < tile_rows).
    # Never a full-N copy: the partial last tile of large inputs is handled by the
    # in-kernel row mask instead of a host-side jnp.pad.
    if n < tile_rows:
        pad = tile_rows - n
        logits = jnp.pad(logits, ((0, pad), (0, 0)))
        targets2d = jnp.pad(targets2d, ((0, pad), (0, 0)))

    num_tiles = pl.cdiv(n, tile_rows)
    # TODO(synk): query the TensorCore count; 2 shards is a no-op on 1-TC chips.
    num_shards = max(1, min(int(num_shards), num_tiles))
    tiles_per_shard = pl.cdiv(num_tiles, num_shards)

    def tile_map(s, j):
        # Clamp tiles past the real extent (they are fully masked in the kernel).
        return (jnp.minimum(s * tiles_per_shard + j, num_tiles - 1), 0)

    kernel = functools.partial(
        _focal_loss_kernel, alpha=float(alpha), gamma=float(gamma),
        n_total=n, tile_rows=tile_rows, tiles_per_shard=tiles_per_shard)

    cost = pl.CostEstimate(
        flops=8 * n * c,
        transcendentals=n * c + 2 * n,
        bytes_accessed=n * c * in_itemsize + n * 4 + num_shards * 4,
    )

    partial_sums = pl.pallas_call(
        kernel,
        out_shape=jax.ShapeDtypeStruct((num_shards, 1), jnp.float32),
        grid_spec=pltpu.PrefetchScalarGridSpec(
            num_scalar_prefetch=0,
            grid=(num_shards, tiles_per_shard),
            in_specs=[
                pl.BlockSpec((tile_rows, c), tile_map),
                pl.BlockSpec((tile_rows, 1), tile_map),
            ],
            out_specs=pl.BlockSpec((1, 1), lambda s, j: (s, 0)),
            scratch_shapes=[pltpu.VMEM((tile_rows, 1), jnp.float32)],
        ),
        compiler_params=pltpu.CompilerParams(
            dimension_semantics=("parallel", "arbitrary"),
            vmem_limit_bytes=vmem_limit,
        ),
        cost_estimate=cost,
    )(logits, targets2d)

    # Final cross-shard sum + mean reduction in the wrapper.
    return jnp.sum(partial_sums) * (1.0 / n)


def _focal_loss_ref(logits, targets, alpha=1.0, gamma=2.0):
    """Plain-JAX reference mirroring F.cross_entropy + focal weighting."""
    logp = jax.nn.log_softmax(logits.astype(jnp.float32), axis=-1)
    ce = -jnp.take_along_axis(logp, targets[:, None].astype(jnp.int32), axis=-1)[:, 0]
    pt = jnp.exp(-ce)
    return jnp.mean(alpha * (1.0 - pt) ** gamma * ce)


if __name__ == "__main__":
    key = jax.random.PRNGKey(0)
    k1, k2, k3, k4, k5, k6 = jax.random.split(key, 6)

    # Test 1: small f32 case, single tile, single shard.
    N, C = 8, 32
    logits = jax.random.normal(k1, (N, C), dtype=jnp.float32)
    targets = jax.random.randint(k2, (N,), 0, C, dtype=jnp.int32)
    loss = jax.block_until_ready(focal_loss(logits, targets, alpha=1.0, gamma=2.0))
    ref = _focal_loss_ref(logits, targets, alpha=1.0, gamma=2.0)
    assert jnp.allclose(loss, ref, atol=1e-5, rtol=1e-5), (loss, ref)

    # Test 2: f32, N not a multiple of tile_rows -> unpadded partial last tile,
    # 2 shards with a clamped (fully masked) trailing tile on shard 1.
    N2, C2 = 20, 64
    logits2 = jax.random.normal(k3, (N2, C2), dtype=jnp.float32)
    targets2 = jax.random.randint(k4, (N2,), 0, C2, dtype=jnp.int32)
    loss2 = jax.block_until_ready(
        focal_loss(logits2, targets2, alpha=1.0, gamma=2.0, tile_rows=8))
    ref2 = _focal_loss_ref(logits2, targets2, alpha=1.0, gamma=2.0)
    assert jnp.allclose(loss2, ref2, atol=1e-5, rtol=1e-5), (loss2, ref2)

    # Test 3: bf16 logits, 16-row packed-sublane tiles, 2 shards, partial tail.
    N3, C3 = 24, 64
    logits3 = jax.random.normal(k5, (N3, C3), dtype=jnp.bfloat16)
    targets3 = jax.random.randint(k6, (N3,), 0, C3, dtype=jnp.int32)
    loss3 = jax.block_until_ready(
        focal_loss(logits3, targets3, alpha=1.0, gamma=2.0, tile_rows=16))
    ref3 = _focal_loss_ref(logits3, targets3, alpha=1.0, gamma=2.0)
    assert jnp.allclose(loss3, ref3, atol=1e-4, rtol=1e-4), (loss3, ref3)

    print("KERNEL_OK")
</pallas_src>

<mosaic_0001>
module attributes {stable_mosaic.version = 11 : i64} {
  func.func @_focal_loss_kernel(%arg0: i32, %arg1: i32, %arg2: memref<8x32xf32, #tpu.memory_space<vmem>>, %arg3: memref<8x1xi32, #tpu.memory_space<vmem>>, %arg4: memref<1x1xf32, #tpu.memory_space<vmem>>, %arg5: memref<8x1xf32, #tpu.memory_space<vmem>>) attributes {dimension_semantics = [#tpu.dimension_semantics<parallel>, #tpu.dimension_semantics<arbitrary>], iteration_bounds = array<i64: 1, 1>, scalar_prefetch = 0 : i64, scratch_operands = 1 : i64, tpu.core_type = #tpu.core_type<tc>, window_params = [{transform_indices = @transform_0, window_bounds = array<i64: 8, 32>}, {transform_indices = @transform_1, window_bounds = array<i64: 8, 1>}, {transform_indices = @transform_2, window_bounds = array<i64: 1, 1>}]} {
    %c0_i32 = arith.constant 0 : i32
    %0 = arith.cmpi eq, %arg1, %c0_i32 : i32
    %1 = arith.extui %0 : i1 to i32
    %c0_i32_0 = arith.constant 0 : i32
    %2 = arith.cmpi ne, %1, %c0_i32_0 : i32
    scf.if %2 {
      %cst_18 = arith.constant 0.000000e+00 : f32
      %47 = vector.broadcast %cst_18 : f32 to vector<8x1xf32>
      %c0_19 = arith.constant 0 : index
      %c0_20 = arith.constant 0 : index
      %48 = vector.load %arg5[%c0_19, %c0_20] : memref<8x1xf32, #tpu.memory_space<vmem>>, vector<8x1xf32>
      tpu.vector_store %arg5[%c0_19, %c0_20], %47 {strides = array<i32>} : memref<8x1xf32, #tpu.memory_space<vmem>>, vector<8x1xf32>,
    } else {
    }
    %c0 = arith.constant 0 : index
    %c0_1 = arith.constant 0 : index
    %3 = vector.load %arg2[%c0, %c0_1] : memref<8x32xf32, #tpu.memory_space<vmem>>, vector<8x32xf32>
    %c0_2 = arith.constant 0 : index
    %c0_3 = arith.constant 0 : index
    %4 = vector.load %arg3[%c0_2, %c0_3] : memref<8x1xi32, #tpu.memory_space<vmem>>, vector<8x1xi32>
    %cst = arith.constant dense<0xFF800000> : vector<8xf32>
    %5 = vector.multi_reduction <maximumf>, %3, %cst [1] : vector<8x32xf32> to vector<8xf32>
    %6 = vector.shape_cast %5 : vector<8xf32> to vector<8x1xf32>
    %7 = vector.broadcast %6 : vector<8x1xf32> to vector<8x32xf32>
    %8 = arith.subf %3, %7 : vector<8x32xf32>
    %9 = math.exp %8 : vector<8x32xf32>
    %cst_4 = arith.constant dense<0.000000e+00> : vector<8xf32>
    %10 = vector.multi_reduction <add>, %9, %cst_4 [1] : vector<8x32xf32> to vector<8xf32>
    %11 = vector.shape_cast %10 : vector<8xf32> to vector<8x1xf32>
    %12 = math.log %11 : vector<8x1xf32>
    %13 = arith.addf %12, %6 : vector<8x1xf32>
    %14 = tpu.iota {dimensions = array<i32: 1>} : vector<8x32xi32>
    %15 = vector.broadcast %4 : vector<8x1xi32> to vector<8x32xi32>
    %16 = arith.cmpi eq, %14, %15 : vector<8x32xi32>
    %cst_5 = arith.constant 0.000000e+00 : f32
    %17 = vector.broadcast %cst_5 : f32 to vector<8x32xf32>
    %18 = arith.select %16, %3, %17 : vector<8x32xi1>, vector<8x32xf32>
    %cst_6 = arith.constant dense<0.000000e+00> : vector<8xf32>
    %19 = vector.multi_reduction <add>, %18, %cst_6 [1] : vector<8x32xf32> to vector<8xf32>
    %20 = vector.shape_cast %19 : vector<8xf32> to vector<8x1xf32>
    %21 = arith.subf %13, %20 : vector<8x1xf32>
    %cst_7 = arith.constant 0.000000e+00 : f32
    %22 = vector.broadcast %cst_7 : f32 to vector<8x1xf32>
    %23 = arith.subf %22, %21 : vector<8x1xf32>
    %24 = math.exp %23 : vector<8x1xf32>
    %cst_8 = arith.constant 1.000000e+00 : f32
    %25 = vector.broadcast %cst_8 : f32 to vector<8x1xf32>
    %26 = arith.subf %25, %24 : vector<8x1xf32>
    %cst_9 = arith.constant 0.000000e+00 : f32
    %27 = vector.broadcast %cst_9 : f32 to vector<8x1xf32>
    %28 = arith.maximumf %26, %27 : vector<8x1xf32>
    %29 = arith.mulf %28, %28 : vector<8x1xf32>
    %30 = arith.mulf %29, %21 : vector<8x1xf32>
    %c1_i32 = arith.constant 1 : i32
    %31 = arith.muli %arg0, %c1_i32 : i32
    %32 = arith.addi %31, %arg1 : i32
    %c8_i32 = arith.constant 8 : i32
    %33 = arith.muli %32, %c8_i32 : i32
    %34 = tpu.iota {dimensions = array<i32: 0>} : vector<8x1xi32>
    %35 = vector.broadcast %33 : i32 to vector<8x1xi32>
    %36 = arith.addi %35, %34 : vector<8x1xi32>
    %c8_i32_10 = arith.constant 8 : i32
    %37 = vector.broadcast %c8_i32_10 : i32 to vector<8x1xi32>
    %38 = arith.cmpi slt, %36, %37 : vector<8x1xi32>
    %cst_11 = arith.constant 0.000000e+00 : f32
    %39 = vector.broadcast %cst_11 : f32 to vector<8x1xf32>
    %40 = arith.select %38, %30, %39 : vector<8x1xi1>, vector<8x1xf32>
    %c0_12 = arith.constant 0 : index
    %c0_13 = arith.constant 0 : index
    %41 = vector.load %arg5[%c0_12, %c0_13] : memref<8x1xf32, #tpu.memory_space<vmem>>, vector<8x1xf32>
    %42 = arith.addf %41, %40 : vector<8x1xf32>
    %c0_14 = arith.constant 0 : index
    %c0_15 = arith.constant 0 : index
    %43 = vector.load %arg5[%c0_14, %c0_15] : memref<8x1xf32, #tpu.memory_space<vmem>>, vector<8x1xf32>
    tpu.vector_store %arg5[%c0_14, %c0_15], %42 {strides = array<i32>} : memref<8x1xf32, #tpu.memory_space<vmem>>, vector<8x1xf32>,
    %c0_i32_16 = arith.constant 0 : i32
    %44 = arith.cmpi eq, %arg1, %c0_i32_16 : i32
    %45 = arith.extui %44 : i1 to i32
    %c0_i32_17 = arith.constant 0 : i32
    %46 = arith.cmpi ne, %45, %c0_i32_17 : i32
    scf.if %46 {
      %c0_18 = arith.constant 0 : index
      %c0_19 = arith.constant 0 : index
      %47 = vector.load %arg5[%c0_18, %c0_19] : memref<8x1xf32, #tpu.memory_space<vmem>>, vector<8x1xf32>
      %cst_20 = arith.constant dense<0.000000e+00> : vector<1xf32>
      %48 = vector.multi_reduction <add>, %47, %cst_20 [0] : vector<8x1xf32> to vector<1xf32>
      %49 = vector.shape_cast %48 : vector<1xf32> to vector<1x1xf32>
      %c0_21 = arith.constant 0 : index
      %c0_22 = arith.constant 0 : index
      %50 = vector.load %arg4[%c0_21, %c0_22] : memref<1x1xf32, #tpu.memory_space<vmem>>, vector<1x1xf32>
      tpu.vector_store %arg4[%c0_21, %c0_22], %49 {strides = array<i32>} : memref<1x1xf32, #tpu.memory_space<vmem>>, vector<1x1xf32>,
    } else {
    }
    return
  }
  func.func @transform_0(%arg0: i32, %arg1: i32) -> (i32, i32) {
    %c1_i32 = arith.constant 1 : i32
    %0 = arith.muli %arg0, %c1_i32 : i32
    %1 = arith.addi %0, %arg1 : i32
    %c0_i32 = arith.constant 0 : i32
    %2 = arith.minsi %1, %c0_i32 : i32
    %c0_i32_0 = arith.constant 0 : i32
    %c0_i32_1 = arith.constant 0 : i32
    return %2, %c0_i32_0 : i32, i32
  }
  func.func @transform_1(%arg0: i32, %arg1: i32) -> (i32, i32) {
    %c1_i32 = arith.constant 1 : i32
    %0 = arith.muli %arg0, %c1_i32 : i32
    %1 = arith.addi %0, %arg1 : i32
    %c0_i32 = arith.constant 0 : i32
    %2 = arith.minsi %1, %c0_i32 : i32
    %c0_i32_0 = arith.constant 0 : i32
    %c0_i32_1 = arith.constant 0 : i32
    return %2, %c0_i32_0 : i32, i32
  }
  func.func @transform_2(%arg0: i32, %arg1: i32) -> (i32, i32) {
    %c0_i32 = arith.constant 0 : i32
    %c0_i32_0 = arith.constant 0 : i32
    return %arg0, %c0_i32 : i32, i32
  }
}

</mosaic_0001>

<llo_original>
// kernel: tpu_custom_call.1
$region0: #{tpu_custom_call.1}
  #allocation0 [shape = 'u32[]', space=smem, size = 0x4, offset = 0x4, fixed_abs, tag = 'smem constant byte address 0x4 - core index']
  #allocation1 [shape = 'u32[144,128]{1,0:T(1,128)}', space=vmem, size = 0x12000, scoped, tag = 'internal scratch']
  #allocation2 [shape = 'f32[8,1]{1,0:T(8,128)}', space=vmem, size = 0x1000, scoped, tag = 'scratch operand']
  %s0 = inlined_call_operand.vmem [shape: f32[8,32], index: 0, kind: input, shape index: {}]
  %s1 = inlined_call_operand.vmem [shape: s32[8,1], index: 1, kind: input, shape index: {}]
  %s2 = inlined_call_operand.hbm [shape: f32[1,1], index: 2, kind: output, shape index: {}]
  %s3 = sld [smem:[#allocation0]]
  $region26: #{tpu_custom_call.1} parent=0
    _
  %s5 = ssub.s32 1, %s3
  %s6 = scalar_select 0, %s5, %s3
  $region1: #{tpu_custom_call.1} parent=0
    #allocation3 [shape = 'u8[512]{0}', space=vmem, size = 0x400, scoped, tag = 'output window, operand 0, single buffered']
    #allocation4 [shape = 's32[1]{0}', space=sflag, size = 0x4, scoped, tag = 'scoped memory for tpu_custom_call.1']
    %7 = vsyncpa [#allocation4], 0
    // Predicated region
    $region2: #{tpu_custom_call.1} parent=1 // pred_check
      _
    $region3: #{tpu_custom_call.1} parent=1 // pred_check_branch
      %9 = sbr.rel (0) target = $region5
    $region4: #{tpu_custom_call.1} parent=1 // pred_region
      %s10 = sadd.s32 0, 0
      %p11 = scmp.lt.s32.totalorder %s10, 0
      %s12 = scalar_select %p11, %s10, 0
      %p13 = scmp.lt.s32.totalorder %s12, 0
      %s14 = scalar_select %p13, %s12, 0
      %s15 = smul.addr %s14, 8
      %s16 = scalar_lea.vmem %s0, %s15
      %s17 = sadd.s32 0, 0
      %p18 = scmp.lt.s32.totalorder %s17, 0
      %s19 = scalar_select %p18, %s17, 0
    $region5: #{tpu_custom_call.1} parent=1 // pred_fallthru
      _
    // Predicated region
    $region6: #{tpu_custom_call.1} parent=1 // pred_check
      _
    $region7: #{tpu_custom_call.1} parent=1 // pred_check_branch
      %21 = sbr.rel (0) target = $region9
    $region8: #{tpu_custom_call.1} parent=1 // pred_region
      %s22 = sadd.s32 0, 0
      %p23 = scmp.lt.s32.totalorder %s22, 0
      %s24 = scalar_select %p23, %s22, 0
      %p25 = scmp.lt.s32.totalorder %s24, 0
      %s26 = scalar_select %p25, %s24, 0
      %s27 = smul.addr %s26, 8
      %s28 = scalar_lea.vmem %s1, %s27
      %s29 = sadd.s32 0, 0
      %p30 = scmp.lt.s32.totalorder %s29, 0
      %s31 = scalar_select %p30, %s29, 0
    $region9: #{tpu_custom_call.1} parent=1 // pred_fallthru
      _
    %s32 = sadd.s32 0, 0
    %p33 = scmp.lt.s32.totalorder %s32, 0
    %s34 = scalar_select %p33, %s32, 0
    %p35 = scmp.lt.s32.totalorder %s34, 0
    %s36 = scalar_select %p35, %s34, 0
    %s37 = smul.addr %s36, 8
    %s38 = scalar_lea.vmem %s0, %s37
    %s39 = sadd.s32 0, 0
    %p40 = scmp.lt.s32.totalorder %s39, 0
    %s41 = scalar_select %p40, %s39, 0
    %p42 = scmp.lt.s32.totalorder %s41, 0
    %s43 = scalar_select %p42, %s41, 0
    %s44 = smul.addr %s43, 8
    %s45 = scalar_lea.vmem %s1, %s44
    %s46 = sadd.s32 0, 0
    %p47 = scmp.lt.s32.totalorder %s46, 0
    %s48 = scalar_select %p47, %s46, 0
    %p49 = scmp.lt.s32.totalorder %s48, 0
    %s50 = scalar_select %p49, %s48, 0
    %s51 = smul.addr %s50, 8
    %s52 = scalar_lea.vmem %s0, %s51
    %s53 = sadd.s32 0, 0
    %p54 = scmp.lt.s32.totalorder %s53, 0
    %s55 = scalar_select %p54, %s53, 0
    %s56 = sadd.s32 0, 0
    %p57 = scmp.lt.s32.totalorder %s56, 0
    %s58 = scalar_select %p57, %s56, 0
    %p59 = scmp.lt.s32.totalorder %s58, 0
    %s60 = scalar_select %p59, %s58, 0
    %s61 = smul.addr %s60, 8
    %s62 = scalar_lea.vmem %s1, %s61
    %s63 = sadd.s32 0, 0
    %p64 = scmp.lt.s32.totalorder %s63, 0
    %s65 = scalar_select %p64, %s63, 0
    %p66 = scmp.eq.s32.totalorder 0, 0
    // Predicated region
    $region10: #{tpu_custom_call.1} parent=1 // pred_check
      %p67 = pneg %p66
    $region11: #{tpu_custom_call.1} parent=1 // pred_check_branch
      %69 = sbr.rel (%p67) target = $region13
    $region12: #{tpu_custom_call.1} parent=1 // pred_region
      %vm70 = vcmask 7168
      %71 = vst.msk [vmem:[#allocation2] sm:$0xff] %vm70, 0.0
    $region13: #{tpu_custom_call.1} parent=1 // pred_fallthru
      _
    %v72 = vld [vmem:[%s52] sm:$0xff]
    %v73 = vld [vmem:[%s62] sm:$0xff]
    %vm74 = vcmask 261120
    %v75 = vsel %vm74, %v72, -inf
    %76 = vmax.xlane.f32.xlu0 %v75
    %v77 = vpop.xlane.xlu0 %76
    %v78 = vsub.f32 %v72, %v77
    %v79 = vmul.f32 %v78, 1.442695
    %v80 = vpow.pop %v79
    %v81 = vsel %vm74, %v80, 0.0
    %82 = vadd.xlane.f32.xlu0 %v81
    %v83 = vpop.xlane.xlu0 %82
    %v84 = vlog2.pop %v83
    %v85 = vmul.f32 %v84, 0.6931472
    %v86 = vadd.f32 %v85, %v77
    %v87 = vlaneseq
    %v88 = vand.u32 %v87, 127
    %89 = vset.pattern.permute.xlu0 0
    %90 = vperm.xlu0 %89, %v73
    %v91 = vpop.permute.xlu0 %90
    %vm92 = vcmp.eq.s32.totalorder %v88, %v91
    %v93 = vsel %vm92, %v72, 0.0
    %v94 = vsel %vm74, %v93, 0.0
    %95 = vadd.xlane.f32.xlu0 %v94
    %v96 = vpop.xlane.xlu0 %95
    %v97 = vsub.f32 %v86, %v96
    %v98 = vsub.f32 0.0, %v97
    %v99 = vmul.f32 %v98, 1.442695
    %v100 = vpow.pop %v99
    %v101 = vsub.f32 1.0, %v100
    %v102 = vmax.f32 %v101, 0.0
    %v103 = vmul.f32 %v102, %v102
    %v104 = vmul.f32 %v103, %v97
    %s105 = sadd.s32 0, 0
    %s106 = smul.u32 %s105, 8
    %v107 = vlaneseq
    %v108 = vshrl.u32 %v107, 7
    %v109 = vstv %s106
    %v110 = vadd.s32 %v109, %v108
    %vm111 = vcmp.lt.s32.totalorder %v110, 8
    %v112 = vsel %vm111, %v104, 0.0
    %v113 = vld [vmem:[#allocation2] sm:$0xff]
    %v114 = vadd.f32 %v113, %v112
    %vm115 = vcmask 7168
    %116 = vst.msk [vmem:[#allocation2] sm:$0xff] %vm115, %v114
    // Predicated region
    $region14: #{tpu_custom_call.1} parent=1 // pred_check
      %p117 = pneg %p66
    $region15: #{tpu_custom_call.1} parent=1 // pred_check_branch
      %119 = sbr.rel (%p117) target = $region17
    $region16: #{tpu_custom_call.1} parent=1 // pred_region
      %v120 = vld [vmem:[#allocation2] sm:$0xff]
      %v121 = vsel %vm115, %v120, 0.0
      %v122 = vrot.slane %v121, 4
      %v123 = vadd.f32 %v121, %v122
      %v124 = vrot.slane %v123, 2
      %v125 = vadd.f32 %v123, %v124
      %v126 = vrot.slane %v125, 1
      %v127 = vadd.f32 %v125, %v126
      %vm128 = vcmask 0
      %129 = vst.msk [vmem:[#allocation3] sm:$0x1] %vm128, %v127
    $region17: #{tpu_custom_call.1} parent=1 // pred_fallthru
      _
    // Predicated region
    $region18: #{tpu_custom_call.1} parent=1 // pred_check
      _
    $region19: #{tpu_custom_call.1} parent=1 // pred_check_branch
      %131 = sbr.rel (0) target = $region21
    $region20: #{tpu_custom_call.1} parent=1 // pred_region
      %s133 = ssub.s32 16, 16
      %134 = vsyncadd [#allocation4], %s133
      %s136 = sshll.u32 [#allocation3], 4
      %s137 = int_to_ptr.vmem [resolvable:$true] %s136
      %139 = dma.vmem_to_hbm [thread:$0]  %s137, 16, %s2, [#allocation4]
    $region21: #{tpu_custom_call.1} parent=1 // pred_fallthru
      _
    // Predicated region
    $region22: #{tpu_custom_call.1} parent=1 // pred_check
      _
    $region23: #{tpu_custom_call.1} parent=1 // pred_check_branch
      %141 = sbr.rel (0) target = $region25
    $region24: #{tpu_custom_call.1} parent=1 // pred_region
      %142 = dma.done [#allocation4], 16
    $region25: #{tpu_custom_call.1} parent=1 // pred_fallthru
      _
    %143 = vsyncpa [#allocation4], 1

</llo_original>
